<compile_context>
chip_gen: v5e
topology: v5e:2x2
jax: 0.10.0
libtpu: 0.0.40
codegen_flags: <defaults>
</compile_context>

<pallas_src>
import numpy as np
import jax
import jax.numpy as jnp
from jax.experimental import pallas as pl
from jax.experimental.pallas import tpu as pltpu

# f32 by default (bit-faithful to the PyTorch module); set to jnp.bfloat16 on
# v6e/v7x for ~2x MXU throughput + halved operand bytes (f32 accumulation kept).
COMPUTE_DTYPE = jnp.float32

# Explicit scoped-VMEM budget: larger than the 16/32 MiB defaults, but with
# headroom under v7x's 64 MiB physical VMEM per TensorCore.
_VMEM_LIMIT_BYTES = 48 * 1024 * 1024


def _compiler_params(semantics):
    return pltpu.CompilerParams(dimension_semantics=semantics,
                                vmem_limit_bytes=_VMEM_LIMIT_BYTES)


def _row_tile(n, target):
    """Largest multiple of 8 that divides n and is <= target; else n (full)."""
    if n <= target:
        return n
    t = (target // 8) * 8
    while t >= 8:
        if n % t == 0:
            return t
        t -= 8
    return n


def _fuse_row_tile(H, W):
    """Rows-of-H tile for the fuse kernel (~2048 output pixels per step)."""
    target = max(8, 2048 // max(W, 1))
    if H <= target:
        return H
    t = (target // 8) * 8
    while t >= 8:
        if H % t == 0 and (t * W) % 128 == 0:   # keep output lane dim 128-dense
            return t
        t -= 8
    return H


# --------------------------------------------------------------------------
# Bilinear 1-D interpolation matrices (PyTorch F.interpolate, align_corners=F)
# --------------------------------------------------------------------------
def _bilinear_matrix_1d(out_size, in_size):
    if in_size == out_size:
        return np.eye(out_size, dtype=np.float32)
    scale = in_size / out_size
    m = np.zeros((out_size, in_size), dtype=np.float32)
    for o in range(out_size):
        src = (o + 0.5) * scale - 0.5
        src = max(src, 0.0)
        i0 = min(int(np.floor(src)), in_size - 1)
        i1 = i0 + (1 if i0 < in_size - 1 else 0)
        l1 = src - i0
        l0 = 1.0 - l1
        m[o, i0] += l0
        m[o, i1] += l1
    return m


# --------------------------------------------------------------------------
# Kernel 1: per-stage MLP projection (Linear).
#   x_ref : (1, TP, C)   tile of flattened pixels
#   w_ref : (C, E)       Linear weight (in x out)
#   b_ref : (1, E)
#   o_ref : (1, TP, E)
# --------------------------------------------------------------------------
def _proj_kernel(x_ref, w_ref, b_ref, o_ref):
    x = x_ref[0].astype(COMPUTE_DTYPE)
    acc = jnp.dot(x, w_ref[...], preferred_element_type=jnp.float32)
    o_ref[0] = acc + b_ref[...]


def run_proj(x_bpc, wproj, bproj):
    B, P, C = x_bpc.shape
    E = wproj.shape[1]
    TP = _row_tile(P, 2048)
    grid = (B, P // TP)
    # NOTE: tiny toy C/E leave the MXU underfed; at production SegFormer dims
    # (C=64..512, E=256/768) the contraction/N dims are already 128-multiples.
    return pl.pallas_call(
        _proj_kernel,
        out_shape=jax.ShapeDtypeStruct((B, P, E), jnp.float32),
        grid_spec=pltpu.PrefetchScalarGridSpec(
            num_scalar_prefetch=0,
            grid=grid,
            in_specs=[
                pl.BlockSpec((1, TP, C), lambda b, i: (b, i, 0)),
                pl.BlockSpec((C, E), lambda b, i: (0, 0)),
                pl.BlockSpec((1, E), lambda b, i: (0, 0)),
            ],
            out_specs=pl.BlockSpec((1, TP, E), lambda b, i: (b, i, 0)),
        ),
        compiler_params=_compiler_params(("parallel", "parallel")),
    )(x_bpc, wproj.astype(COMPUTE_DTYPE), bproj)


# --------------------------------------------------------------------------
# Kernel 2: height (row) pass of the separable bilinear upsample.
#   rh_ref : (TH, h)      tile of the (H, h) row-interpolation matrix
#   p_ref  : (1, h, w*E)  projected stage map, rows = input image rows
#   o_ref  : (1, TH, w*E)
# --------------------------------------------------------------------------
def _height_kernel(rh_ref, p_ref, o_ref):
    o_ref[0] = jnp.dot(rh_ref[...], p_ref[0].astype(COMPUTE_DTYPE),
                       preferred_element_type=jnp.float32)


def run_height_upsample(p_view, rh):
    B, h, WE = p_view.shape
    H = rh.shape[0]
    TH = _row_tile(H, 128)
    grid = (B, H // TH)
    return pl.pallas_call(
        _height_kernel,
        out_shape=jax.ShapeDtypeStruct((B, H, WE), jnp.float32),
        grid_spec=pltpu.PrefetchScalarGridSpec(
            num_scalar_prefetch=0,
            grid=grid,
            in_specs=[
                pl.BlockSpec((TH, h), lambda b, i: (i, 0)),
                pl.BlockSpec((1, h, WE), lambda b, i: (b, 0, 0)),
            ],
            out_specs=pl.BlockSpec((1, TH, WE), lambda b, i: (b, i, 0)),
        ),
        compiler_params=_compiler_params(("parallel", "parallel")),
    )(rh.astype(COMPUTE_DTYPE), p_view)


# --------------------------------------------------------------------------
# Kernel 3: width pass + linear_fuse (split weight, no concat) + folded BN +
#           ReLU + linear_pred, emitted class-major (lane-dense HW last dim).
# Per grid step (b, i): TH output image rows of one batch element.
#   for each stage (reversed order, matching torch.cat(outs[::-1])):
#     t_ref  : (1, TH, w_s, E)  height-upsampled map (w_s == W if no width up)
#     rw_ref : (W, w_s)         width-interpolation matrix (only if w_s != W)
#     wf_ref : (E, E)           row block of the linear_fuse weight
#   scale/shift : (1, E)        folded BatchNorm
#   wpredT      : (NC, E)       linear_pred weight (class-major)
#   bpredT      : (NC, 1)
#   out         : (1, NC, TH*W)
# --------------------------------------------------------------------------
def _make_fuse_kernel(stage_meta, TH, W, E):
    def kernel(*refs):
        idx = 0
        acc = None
        for needs_w, w in stage_meta:
            t_ref = refs[idx]; idx += 1
            rw_ref = None
            if needs_w:
                rw_ref = refs[idx]; idx += 1
            wf_ref = refs[idx]; idx += 1

            t = t_ref[0].astype(COMPUTE_DTYPE)                 # (TH, w, E)
            if needs_w:
                rw_b = jnp.broadcast_to(rw_ref[...], (TH, W, w))
                t = jnp.einsum('tXx,txe->tXe', rw_b, t,
                               preferred_element_type=jnp.float32)
                t = t.astype(COMPUTE_DTYPE)                    # (TH, W, E)
            up = t.reshape(TH * W, E)
            contrib = jnp.dot(up, wf_ref[...],
                              preferred_element_type=jnp.float32)
            acc = contrib if acc is None else acc + contrib

        scale_ref, shift_ref, wpredT_ref, bpredT_ref, out_ref = refs[idx:idx + 5]

        act = acc * scale_ref[...] + shift_ref[...]            # folded BN (f32)
        act = jnp.maximum(act, 0.0)                            # ReLU
        # TODO(synk): Dropout2d is identity (eval mode).
        # class-major prediction: (NC, E) . (TH*W, E)^T -> (NC, TH*W)
        predT = jax.lax.dot_general(
            wpredT_ref[...], act.astype(COMPUTE_DTYPE),
            (((1,), (1,)), ((), ())), preferred_element_type=jnp.float32)
        out_ref[0] = predT + bpredT_ref[...]
    return kernel


def run_fuse_pred(stages, wf_blocks, bn_scale, bn_shift, wpredT, bpredT, H, W):
    """stages: list of (t (B,H,w,E) f32, rw (W,w) or None) in reversed order."""
    B = stages[0][0].shape[0]
    E = wf_blocks[0].shape[1]
    NC = wpredT.shape[0]
    TH = _fuse_row_tile(H, W)
    T_hw = TH * W
    grid = (B, H // TH)

    stage_meta, inputs, in_specs = [], [], []
    for (t, rw), wf in zip(stages, wf_blocks):
        w = t.shape[2]
        needs_w = rw is not None
        stage_meta.append((needs_w, w))
        inputs.append(t)
        in_specs.append(pl.BlockSpec((1, TH, w, E), lambda b, i: (b, i, 0, 0)))
        if needs_w:
            inputs.append(rw.astype(COMPUTE_DTYPE))
            in_specs.append(pl.BlockSpec((W, w), lambda b, i: (0, 0)))
        inputs.append(wf.astype(COMPUTE_DTYPE))
        in_specs.append(pl.BlockSpec((E, E), lambda b, i: (0, 0)))

    inputs += [bn_scale, bn_shift, wpredT.astype(COMPUTE_DTYPE), bpredT]
    in_specs += [
        pl.BlockSpec((1, E), lambda b, i: (0, 0)),
        pl.BlockSpec((1, E), lambda b, i: (0, 0)),
        pl.BlockSpec((NC, E), lambda b, i: (0, 0)),
        pl.BlockSpec((NC, 1), lambda b, i: (0, 0)),
    ]

    kernel = _make_fuse_kernel(stage_meta, TH, W, E)
    return pl.pallas_call(
        kernel,
        out_shape=jax.ShapeDtypeStruct((B, NC, H * W), jnp.float32),
        grid_spec=pltpu.PrefetchScalarGridSpec(
            num_scalar_prefetch=0,
            grid=grid,
            in_specs=in_specs,
            out_specs=pl.BlockSpec((1, NC, T_hw), lambda b, i: (b, 0, i)),
        ),
        compiler_params=_compiler_params(("parallel", "parallel")),
    )(*inputs)


# --------------------------------------------------------------------------
# Full SegFormerHead forward (glue in plain JAX; reshapes are contiguous/free).
# --------------------------------------------------------------------------
def segformer_head_forward(features, proj_params,
                           wfuse, bn_scale, bn_shift, wpred, bpred, H, W):
    B = features[0].shape[0]
    E = proj_params[0][0].shape[1]
    n = len(features)
    NC = wpred.shape[1]

    stage_tensors = []   # (t (B, H, w, E), rw or None), in feature order
    for x, (wp, bp) in zip(features, proj_params):
        Bx, C, h, w = x.shape
        x_bpc = jnp.transpose(x, (0, 2, 3, 1)).reshape(Bx, h * w, C)
        p = run_proj(x_bpc, wp, bp)                           # (B, h*w, E)
        if h != H:                                            # height pass
            rh = jnp.asarray(_bilinear_matrix_1d(H, h))
            p = run_height_upsample(p.reshape(Bx, h, w * E), rh)   # (B, H, w*E)
        t = p.reshape(Bx, H, w, E)                            # free reshape
        rw = jnp.asarray(_bilinear_matrix_1d(W, w)) if w != W else None
        stage_tensors.append((t, rw))

    # torch.cat(outs[::-1], dim=1): fuse-weight row block j pairs with stage n-1-j
    rev = stage_tensors[::-1]
    wf_blocks = [wfuse[j * E:(j + 1) * E, :] for j in range(n)]
    wpredT = jnp.transpose(wpred)                             # (NC, E)
    bpredT = jnp.reshape(bpred, (NC, 1))

    seg = run_fuse_pred(rev, wf_blocks, bn_scale, bn_shift,
                        wpredT, bpredT, H, W)                 # (B, NC, H*W)
    return seg.reshape(B, NC, H, W)                           # NCHW, free


# --------------------------------------------------------------------------
# Pure-JAX reference (dense, concat-based) for validation at toy sizes.
# --------------------------------------------------------------------------
def _reference_forward(features, proj_params,
                       wfuse, bn_scale, bn_shift, wpred, bpred, H, W):
    B = features[0].shape[0]
    E = proj_params[0][0].shape[1]
    outs = []
    for x, (wp, bp) in zip(features, proj_params):
        Bx, C, h, w = x.shape
        xf = jnp.transpose(x, (0, 2, 3, 1))                    # (B, h, w, C)
        p = jnp.einsum('byxc,ce->byxe', xf, wp) + bp.reshape(1, 1, 1, E)
        rh = jnp.asarray(_bilinear_matrix_1d(H, h))
        rw = jnp.asarray(_bilinear_matrix_1d(W, w))
        up = jnp.einsum('Yy,Xx,byxe->bYXe', rh, rw, p)
        outs.append(up.reshape(Bx, H * W, E))
    cat = jnp.concatenate(outs[::-1], axis=-1)
    fused = jnp.einsum('bpc,ce->bpe', cat, wfuse)
    fused = jnp.maximum(fused * bn_scale + bn_shift, 0.0)
    seg = jnp.einsum('bpe,ec->bpc', fused, wpred) + bpred
    return jnp.transpose(seg.reshape(B, H, W, -1), (0, 3, 1, 2))


if __name__ == "__main__":
    B = 2
    H = W = 16
    dims = [8, 16, 24, 32]       # per-stage channel dims (small synthetic)
    strides = [1, 2, 4, 8]       # feature[i] spatial = (H//s, W//s)
    embed_dim = 32
    num_classes = 19
    eps = 1e-5

    keys = iter(jax.random.split(jax.random.PRNGKey(0), 32))

    # synthetic input features (NCHW, like PyTorch)
    features = []
    for d, s in zip(dims, strides):
        h, w = H // s, W // s
        features.append(jax.random.normal(next(keys), (B, d, h, w), jnp.float32))

    # MLP (Linear) params per stage: stored as (in, out) = W.T of PyTorch layout
    proj_params = []
    for d in dims:
        wp = jax.random.normal(next(keys), (d, embed_dim), jnp.float32) * 0.05
        bp = jax.random.normal(next(keys), (1, embed_dim), jnp.float32) * 0.05
        proj_params.append((wp, bp))

    # linear_fuse: Conv2d(4E, E, 1, bias=False) -> weight as (4E, E)
    wfuse = jax.random.normal(next(keys), (4 * embed_dim, embed_dim),
                              jnp.float32) * 0.05
    # BatchNorm2d(E) eval-mode params, folded into scale / shift
    gamma = 1.0 + 0.1 * jax.random.normal(next(keys), (embed_dim,), jnp.float32)
    beta = 0.1 * jax.random.normal(next(keys), (embed_dim,), jnp.float32)
    run_mean = 0.1 * jax.random.normal(next(keys), (embed_dim,), jnp.float32)
    run_var = 1.0 + 0.1 * jax.random.uniform(next(keys), (embed_dim,), jnp.float32)
    bn_scale = (gamma / jnp.sqrt(run_var + eps)).reshape(1, embed_dim)
    bn_shift = (beta - run_mean * (gamma / jnp.sqrt(run_var + eps))
                ).reshape(1, embed_dim)

    # linear_pred: Conv2d(E, num_classes, 1) -> weight as (E, NC), bias (1, NC)
    wpred = jax.random.normal(next(keys), (embed_dim, num_classes),
                              jnp.float32) * 0.05
    bpred = jax.random.normal(next(keys), (1, num_classes), jnp.float32) * 0.05

    seg = segformer_head_forward(features, proj_params,
                                 wfuse, bn_scale, bn_shift, wpred, bpred, H, W)
    seg = jax.block_until_ready(seg)
    assert seg.shape == (B, num_classes, H, W), seg.shape
    assert bool(jnp.all(jnp.isfinite(seg)))

    # numerical check against the dense pure-JAX reference
    ref = jax.block_until_ready(
        _reference_forward(features, proj_params,
                           wfuse, bn_scale, bn_shift, wpred, bpred, H, W))
    max_err = float(jnp.max(jnp.abs(seg - ref)))
    assert max_err < 2e-3, f"max abs err vs reference = {max_err}"

    print("KERNEL_OK")
</pallas_src>

<mosaic_0001>
module attributes {stable_mosaic.version = 11 : i64} {
  func.func @_proj_kernel(%arg0: i32, %arg1: i32, %arg2: memref<1x256x8xf32, #tpu.memory_space<vmem>>, %arg3: memref<8x32xf32, #tpu.memory_space<vmem>>, %arg4: memref<1x32xf32, #tpu.memory_space<vmem>>, %arg5: memref<1x256x32xf32, #tpu.memory_space<vmem>>) attributes {dimension_semantics = [#tpu.dimension_semantics<parallel>, #tpu.dimension_semantics<parallel>], iteration_bounds = array<i64: 2, 1>, scalar_prefetch = 0 : i64, scratch_operands = 0 : i64, tpu.core_type = #tpu.core_type<tc>, window_params = [{transform_indices = @transform_0, window_bounds = array<i64: 1, 256, 8>}, {pipeline_mode = #tpu.pipeline_mode<synchronous>, transform_indices = @transform_1, window_bounds = array<i64: 8, 32>}, {pipeline_mode = #tpu.pipeline_mode<synchronous>, transform_indices = @transform_2, window_bounds = array<i64: 1, 32>}, {transform_indices = @transform_3, window_bounds = array<i64: 1, 256, 32>}]} {
    %c0 = arith.constant 0 : index
    %c0_0 = arith.constant 0 : index
    %c0_1 = arith.constant 0 : index
    %0 = vector.load %arg2[%c0, %c0_0, %c0_1] : memref<1x256x8xf32, #tpu.memory_space<vmem>>, vector<1x256x8xf32>
    %1 = vector.shape_cast %0 : vector<1x256x8xf32> to vector<256x8xf32>
    %c0_2 = arith.constant 0 : index
    %c0_3 = arith.constant 0 : index
    %2 = vector.load %arg3[%c0_2, %c0_3] : memref<8x32xf32, #tpu.memory_space<vmem>>, vector<8x32xf32>
    %cst = arith.constant dense<0.000000e+00> : vector<256x32xf32>
    %3 = tpu.matmul %1, %2, %cst {dimension_numbers = #tpu.dot_dimension_numbers<[1], [0], [0], [1], [0, 0, 1, 1], [], []>} : vector<256x8xf32>, vector<8x32xf32>, vector<256x32xf32> -> vector<256x32xf32>
    %c0_4 = arith.constant 0 : index
    %c0_5 = arith.constant 0 : index
    %4 = vector.load %arg4[%c0_4, %c0_5] : memref<1x32xf32, #tpu.memory_space<vmem>>, vector<1x32xf32>
    %5 = vector.broadcast %4 : vector<1x32xf32> to vector<256x32xf32>
    %6 = arith.addf %3, %5 : vector<256x32xf32>
    %c0_6 = arith.constant 0 : index
    %c0_7 = arith.constant 0 : index
    %c0_8 = arith.constant 0 : index
    %7 = vector.load %arg5[%c0_6, %c0_7, %c0_8] : memref<1x256x32xf32, #tpu.memory_space<vmem>>, vector<1x256x32xf32>
    %8 = vector.shape_cast %7 : vector<1x256x32xf32> to vector<256x32xf32>
    %9 = vector.shape_cast %6 : vector<256x32xf32> to vector<1x256x32xf32>
    tpu.vector_store %arg5[%c0_6, %c0_7, %c0_8], %9 {strides = array<i32>} : memref<1x256x32xf32, #tpu.memory_space<vmem>>, vector<1x256x32xf32>,
    return
  }
  func.func @transform_0(%arg0: i32, %arg1: i32) -> (i32, i32, i32) {
    %c0_i32 = arith.constant 0 : i32
    %c0_i32_0 = arith.constant 0 : i32
    return %arg0, %arg1, %c0_i32 : i32, i32, i32
  }
  func.func @transform_1(%arg0: i32, %arg1: i32) -> (i32, i32) {
    %c0_i32 = arith.constant 0 : i32
    %c0_i32_0 = arith.constant 0 : i32
    %c0_i32_1 = arith.constant 0 : i32
    return %c0_i32, %c0_i32_0 : i32, i32
  }
  func.func @transform_2(%arg0: i32, %arg1: i32) -> (i32, i32) {
    %c0_i32 = arith.constant 0 : i32
    %c0_i32_0 = arith.constant 0 : i32
    %c0_i32_1 = arith.constant 0 : i32
    return %c0_i32, %c0_i32_0 : i32, i32
  }
  func.func @transform_3(%arg0: i32, %arg1: i32) -> (i32, i32, i32) {
    %c0_i32 = arith.constant 0 : i32
    %c0_i32_0 = arith.constant 0 : i32
    return %arg0, %arg1, %c0_i32 : i32, i32, i32
  }
}

</mosaic_0001>

<llo_original>
// kernel: tpu_custom_call.1
$region0: #{tpu_custom_call.1}
  #allocation0 [shape = 'u32[]', space=smem, size = 0x4, offset = 0x4, fixed_abs, tag = 'smem constant byte address 0x4 - core index']
  #allocation1 [shape = 'u32[72,128]{1,0:T(1,128)}', space=vmem, size = 0x9000, scoped, tag = 'internal scratch']
  %s0 = inlined_call_operand.vmem [shape: f32[2,256,8], index: 0, kind: input, shape index: {}]
  %s1 = inlined_call_operand.vmem [shape: f32[8,32], index: 1, kind: input, shape index: {}]
  %s2 = inlined_call_operand.vmem [shape: f32[1,32], index: 2, kind: input, shape index: {}]
  %s3 = inlined_call_operand.vmem [shape: f32[2,256,32], index: 3, kind: output, shape index: {}]
  %s4 = sld [smem:[#allocation0]]
  $region45: #{tpu_custom_call.1} parent=0
    _
  %s6 = ssub.s32 1, %s4
  %s7 = scalar_select 0, %s6, %s4
  loop: start=0, step=1, limit=4
  $region2: #{tpu_custom_call.1} parent=0 // loop_pre_header
    _
  $region3: #{tpu_custom_call.1} parent=0 // loop_header
    %s9 = sphi 0, %s13
    %p10 = scmp.ge.s32.totalorder %s9, 4
    %s16 = sphi 0, %s28
    %s17 = sphi 0, %s24
    %s18 = sphi 0, %s16
    %s19 = sphi 0, %s17
    %s20 = sphi 0, %s18
    %s21 = sphi 0, %s19
    %s33 = sphi 0, %s35
    %s36 = sphi 0, %s33
    %s37 = sphi 0, %s36
    %s53 = sphi 0, %s37
    %s57 = sphi 0, %s57
    %s59 = sphi 0, %s57
    %s60 = sphi 0, %s59
    %s74 = sphi 0, %s60
    %s78 = sphi 0, %s78
    %s80 = sphi 0, %s78
    %s81 = sphi 0, %s80
    %s95 = sphi 0, %s81
    %s103 = sphi 0, %s105
    %s106 = sphi 0, %s103
    %s107 = sphi 0, %s106
    %s123 = sphi 0, %s107
  $region4: #{tpu_custom_call.1} parent=0 // loop_header_branch
    %12 = sbr.rel (%p10) target = $region8
  $region5: #{tpu_custom_call.1} parent=0 // loop_body
    %s14 = ssub.s32 %s9, 1
    %s15 = ssub.s32 %s9, 2
    %s22 = sadd.s32 1, %s17
    %p23 = scmp.ge.s32.totalorder %s22, 1
    %s24 = scalar_select %p23, 0, %s22
    %s25 = sadd.s32 1, %s16
    %s26 = scalar_select %p23, %s25, %s16
    %p27 = scmp.ge.s32.totalorder %s26, 2
    %s28 = scalar_select %p27, 0, %s26
    %s29 = ssub.s32 %s16, %s28
    %s30 = ssub.s32 %s17, %s24
    %s31 = sor.u32 %s29, %s30
    %p32 = scmp.eq.s32.totalorder %s31, 0
    %s34 = sadd.s32 %s33, 1
    %s35 = scalar_select %p32, %s33, %s34
    %p38 = pneg %p32
    %p39 = scmp.eq.s32.totalorder %s9, 1
    %p40 = por %p38, %p39
    %p41 = scmp.ne.s32.totalorder %s33, %s36
    %p42 = scmp.eq.s32.totalorder %s9, 0
    %p43 = por %p41, %p42
    %p44 = scmp.ne.s32.totalorder %s33, %s36
    %p45 = scmp.eq.s32.totalorder %s14, 1
    %p46 = por %p44, %p45
    %p47 = scmp.ne.s32.totalorder %s36, %s37
    %p48 = scmp.eq.s32.totalorder %s14, 0
    %p49 = por %p47, %p48
    %p50 = scmp.ne.s32.totalorder %s36, %s37
    %p51 = scmp.eq.s32.totalorder %s15, 1
    %p52 = por %p50, %p51
    %p54 = scmp.ne.s32.totalorder %s37, %s53
    %p55 = scmp.eq.s32.totalorder %s15, 0
    %p56 = por %p54, %p55
    %s58 = sadd.s32 %s57, 1
    %p61 = scmp.eq.s32.totalorder %s9, 1
    %p62 = scmp.ne.s32.totalorder %s57, %s59
    %p63 = scmp.eq.s32.totalorder %s9, 0
    %p64 = por %p62, %p63
    %p65 = scmp.ne.s32.totalorder %s57, %s59
    %p66 = scmp.eq.s32.totalorder %s14, 1
    %p67 = por %p65, %p66
    %p68 = scmp.ne.s32.totalorder %s59, %s60
    %p69 = scmp.eq.s32.totalorder %s14, 0
    %p70 = por %p68, %p69
    %p71 = scmp.ne.s32.totalorder %s59, %s60
    %p72 = scmp.eq.s32.totalorder %s15, 1
    %p73 = por %p71, %p72
    %p75 = scmp.ne.s32.totalorder %s60, %s74
    %p76 = scmp.eq.s32.totalorder %s15, 0
    %p77 = por %p75, %p76
    %s79 = sadd.s32 %s78, 1
    %p82 = scmp.eq.s32.totalorder %s9, 1
    %p83 = scmp.ne.s32.totalorder %s78, %s80
    %p84 = scmp.eq.s32.totalorder %s9, 0
    %p85 = por %p83, %p84
    %p86 = scmp.ne.s32.totalorder %s78, %s80
    %p87 = scmp.eq.s32.totalorder %s14, 1
    %p88 = por %p86, %p87
    %p89 = scmp.ne.s32.totalorder %s80, %s81
    %p90 = scmp.eq.s32.totalorder %s14, 0
    %p91 = por %p89, %p90
    %p92 = scmp.ne.s32.totalorder %s80, %s81
    %p93 = scmp.eq.s32.totalorder %s15, 1
    %p94 = por %p92, %p93
    %p96 = scmp.ne.s32.totalorder %s81, %s95
    %p97 = scmp.eq.s32.totalorder %s15, 0
    %p98 = por %p96, %p97
    %s99 = ssub.s32 %s16, %s28
    %s100 = ssub.s32 %s17, %s24
    %s101 = sor.u32 %s99, %s100
    %p102 = scmp.eq.s32.totalorder %s101, 0
    %s104 = sadd.s32 %s103, 1
    %s105 = scalar_select %p102, %s103, %s104
    %p108 = pneg %p102
    %p109 = scmp.eq.s32.totalorder %s9, 1
    %p110 = por %p108, %p109
    %p111 = scmp.ne.s32.totalorder %s103, %s106
    %p112 = scmp.eq.s32.totalorder %s9, 0
    %p113 = por %p111, %p112
    %p114 = scmp.ne.s32.totalorder %s103, %s106
    %p115 = scmp.eq.s32.totalorder %s14, 1
    %p116 = por %p114, %p115
    %p117 = scmp.ne.s32.totalorder %s106, %s107
    %p118 = scmp.eq.s32.totalorder %s14, 0
    %p119 = por %p117, %p118
    %p120 = scmp.ne.s32.totalorder %s106, %s107
    %p121 = scmp.eq.s32.totalorder %s15, 1
    %p122 = por %p120, %p121
    %p124 = scmp.ne.s32.totalorder %s107, %s123
    %p125 = scmp.eq.s32.totalorder %s15, 0
    %p126 = por %p124, %p125
    %p127 = scmp.le.s32.totalorder 1, %s9
    %p128 = scmp.lt.s32.totalorder %s9, 3
    %p129 = pnand %p127, %p128
    %p130 = pneg %p129
    // Predicated region
    $region9: #{tpu_custom_call.1} parent=5 // pred_check
      _
    $region10: #{tpu_custom_call.1} parent=5 // pred_check_branch
      %132 = sbr.rel (%p129) target = $region12
    $region11: #{tpu_custom_call.1} parent=5 // pred_region
      %s133 = ssub.s32 %s9, 1
      // Predicated region
      $region13: #{tpu_custom_call.1} parent=11 // pred_check
        %p134 = pneg %p70
      $region14: #{tpu_custom_call.1} parent=11 // pred_check_branch
        %136 = sbr.rel (%p134) target = $region16
      $region15: #{tpu_custom_call.1} parent=11 // pred_region
        _
      $region16: #{tpu_custom_call.1} parent=11 // pred_fallthru
        _
      // Predicated region
      $region17: #{tpu_custom_call.1} parent=11 // pred_check
        %p137 = pneg %p91
      $region18: #{tpu_custom_call.1} parent=11 // pred_check_branch
        %139 = sbr.rel (%p137) target = $region20
      $region19: #{tpu_custom_call.1} parent=11 // pred_region
        _
      $region20: #{tpu_custom_call.1} parent=11 // pred_fallthru
        _
    $region12: #{tpu_custom_call.1} parent=5 // pred_fallthru
      _
    %p140 = scmp.lt.s32.totalorder %s9, 2
    // Predicated region
    $region21: #{tpu_custom_call.1} parent=5 // pred_check
      %p141 = pneg %p140
    $region22: #{tpu_custom_call.1} parent=5 // pred_check_branch
      %143 = sbr.rel (%p141) target = $region24
    $region23: #{tpu_custom_call.1} parent=5 // pred_region
      // Predicated region
      $region25: #{tpu_custom_call.1} parent=23 // pred_check
        %p144 = pneg %p43
      $region26: #{tpu_custom_call.1} parent=23 // pred_check_branch
        %146 = sbr.rel (%p144) target = $region28
      $region27: #{tpu_custom_call.1} parent=23 // pred_region
        %s147 = smul.u32 32, %s17
        %p148 = scmp.lt.s32.totalorder %s16, 1
        %s149 = scalar_select %p148, %s16, 1
        %p150 = scmp.lt.s32.totalorder %s147, 31
        %s151 = scalar_select %p150, %s147, 31
        %s152 = smul.addr %s149, 32
        %s153 = sadd.s32 %s151, %s152
        %s154 = smul.addr %s153, 8
        %s155 = scalar_lea.vmem %s0, %s154
        %s156 = smul.u32 32, %s17
      $region28: #{tpu_custom_call.1} parent=23 // pred_fallthru
        _
    $region24: #{tpu_custom_call.1} parent=5 // pred_fallthru
      _
    %p157 = scmp.le.s32.totalorder 1, %s9
    %p158 = scmp.lt.s32.totalorder %s9, 3
    %p159 = pnand %p157, %p158
    %p160 = pneg %p159
    // Predicated region
    $region29: #{tpu_custom_call.1} parent=5 // pred_check
      _
    $region30: #{tpu_custom_call.1} parent=5 // pred_check_branch
      %162 = sbr.rel (%p159) target = $region32
    $region31: #{tpu_custom_call.1} parent=5 // pred_region
      %s163 = ssub.s32 %s9, 1
      %s164 = smul.u32 32, %s19
      %p165 = scmp.lt.s32.totalorder %s18, 1
      %s166 = scalar_select %p165, %s18, 1
      %p167 = scmp.lt.s32.totalorder %s164, 31
      %s168 = scalar_select %p167, %s164, 31
      %s169 = smul.addr %s166, 32
      %s170 = sadd.s32 %s168, %s169
      %s171 = smul.addr %s170, 8
      %s172 = scalar_lea.vmem %s0, %s171
      %p173 = pneg %p49
      %p174 = pneg %p46
      %p175 = pneg %p70
      %p176 = pneg %p67
      %p177 = pneg %p91
      %p178 = pneg %p88
      %p179 = pneg %p119
      %p180 = pneg %p116
      %s181 = smul.u32 32, %s19
      %p182 = scmp.lt.s32.totalorder %s18, 1
      %s183 = scalar_select %p182, %s18, 1
      %p184 = scmp.lt.s32.totalorder %s181, 31
      %s185 = scalar_select %p184, %s181, 31
      %s186 = smul.addr %s183, 32
      %s187 = sadd.s32 %s185, %s186
      %s188 = smul.addr %s187, 8
      %s189 = scalar_lea.vmem %s3, %s188
      %s190 = smul.u32 32, %s19
      %p191 = scmp.lt.s32.totalorder %s18, 1
      %s192 = scalar_select %p191, %s18, 1
      %p193 = scmp.lt.s32.totalorder %s190, 31
      %s194 = scalar_select %p193, %s190, 31
      %s195 = smul.addr %s192, 32
      %s196 = sadd.s32 %s194, %s195
      %s197 = smul.addr %s196, 8
      %s198 = scalar_lea.vmem %s0, %s197
      %s199 = smul.u32 32, %s19
      %s200 = smul.u32 32, %s19
      %p201 = scmp.lt.s32.totalorder %s18, 1
      %s202 = scalar_select %p201, %s18, 1
      %p203 = scmp.lt.s32.totalorder %s200, 31
      %s204 = scalar_select %p203, %s200, 31
      %s205 = smul.addr %s202, 32
      %s206 = sadd.s32 %s204, %s205
      %s207 = smul.addr %s206, 8
      %s208 = scalar_lea.vmem %s3, %s207
      %s209 = smul.u32 32, %s19
      %v210 = vld [vmem:[%s198] sm:$0xff]
      %v211 = vld [vmem:[%s198 + $0x8] sm:$0xff]
      %v212 = vld [vmem:[%s198 + $0x10] sm:$0xff]
      %v213 = vld [vmem:[%s198 + $0x18] sm:$0xff]
      %v214 = vld [vmem:[%s198 + $0x20] sm:$0xff]
      %v215 = vld [vmem:[%s198 + $0x28] sm:$0xff]
      %v216 = vld [vmem:[%s198 + $0x30] sm:$0xff]
      %v217 = vld [vmem:[%s198 + $0x38] sm:$0xff]
      %v218 = vld [vmem:[%s198 + $0x40] sm:$0xff]
      %v219 = vld [vmem:[%s198 + $0x48] sm:$0xff]
      %v220 = vld [vmem:[%s198 + $0x50] sm:$0xff]
      %v221 = vld [vmem:[%s198 + $0x58] sm:$0xff]
      %v222 = vld [vmem:[%s198 + $0x60] sm:$0xff]
      %v223 = vld [vmem:[%s198 + $0x68] sm:$0xff]
      %v224 = vld [vmem:[%s198 + $0x70] sm:$0xff]
      %v225 = vld [vmem:[%s198 + $0x78] sm:$0xff]
      %v226 = vld [vmem:[%s198 + $0x80] sm:$0xff]
      %v227 = vld [vmem:[%s198 + $0x88] sm:$0xff]
      %v228 = vld [vmem:[%s198 + $0x90] sm:$0xff]
      %v229 = vld [vmem:[%s198 + $0x98] sm:$0xff]
      %v230 = vld [vmem:[%s198 + $0xa0] sm:$0xff]
      %v231 = vld [vmem:[%s198 + $0xa8] sm:$0xff]
      %v232 = vld [vmem:[%s198 + $0xb0] sm:$0xff]
      %v233 = vld [vmem:[%s198 + $0xb8] sm:$0xff]
      %v234 = vld [vmem:[%s198 + $0xc0] sm:$0xff]
      %v235 = vld [vmem:[%s198 + $0xc8] sm:$0xff]
      %v236 = vld [vmem:[%s198 + $0xd0] sm:$0xff]
      %v237 = vld [vmem:[%s198 + $0xd8] sm:$0xff]
      %v238 = vld [vmem:[%s198 + $0xe0] sm:$0xff]
      %v239 = vld [vmem:[%s198 + $0xe8] sm:$0xff]
      %v240 = vld [vmem:[%s198 + $0xf0] sm:$0xff]
      %v241 = vld [vmem:[%s198 + $0xf8] sm:$0xff]
      %v242 = vld [vmem:[%s1] sm:$0xff]
      %v243 = vld [vmem:[%s2] sm:$0x1]
      %v245 = vperm.slane %v243, 0
      %vm247 = vcmask 64512
      %v249 = vsel %vm247, %v210, 0
      %v252 = vsel %vm247, %v211, 0
      %v255 = vsel %vm247, %v212, 0
      %v258 = vsel %vm247, %v213, 0
      %v261 = vsel %vm247, %v214, 0
      %v264 = vsel %vm247, %v215, 0
      %v267 = vsel %vm247, %v216, 0
      %v270 = vsel %vm247, %v217, 0
      %v273 = vsel %vm247, %v218, 0
      %v276 = vsel %vm247, %v219, 0
      %v279 = vsel %vm247, %v220, 0
      %v282 = vsel %vm247, %v221, 0
      %v285 = vsel %vm247, %v222, 0
      %v288 = vsel %vm247, %v223, 0
      %v291 = vsel %vm247, %v224, 0
      %v294 = vsel %vm247, %v225, 0
      %v297 = vsel %vm247, %v226, 0
      %v300 = vsel %vm247, %v227, 0
      %v303 = vsel %vm247, %v228, 0
      %v306 = vsel %vm247, %v229, 0
      %v309 = vsel %vm247, %v230, 0
      %v312 = vsel %vm247, %v231, 0
      %v315 = vsel %vm247, %v232, 0
      %v318 = vsel %vm247, %v233, 0
      %v321 = vsel %vm247, %v234, 0
      %v324 = vsel %vm247, %v235, 0
      %v327 = vsel %vm247, %v236, 0
      %v330 = vsel %vm247, %v237, 0
      %v333 = vsel %vm247, %v238, 0
      %v336 = vsel %vm247, %v239, 0
      %v339 = vsel %vm247, %v240, 0
      %v342 = vsel %vm247, %v241, 0
      %344 = vmatpush.msra.mxu0 0.0
      %345 = vmatpush.msra.mxu0 0.0
      %346 = vmatpush.msra.mxu0 0.0
      %347 = vmatpush.msra.mxu0 0.0
      %348 = vmatpush.msra.mxu0 0.0
      %349 = vmatpush.msra.mxu0 0.0
      %350 = vmatpush.msra.mxu0 0.0
      %351 = vmatpush.msra.mxu0 0.0
      %352 = vmatpush.msra.mxu0 0.0
      %353 = vmatpush.msra.mxu0 0.0
      %354 = vmatpush.msra.mxu0 0.0
      %355 = vmatpush.msra.mxu0 0.0
      %356 = vmatpush.msra.mxu0 0.0
      %357 = vmatpush.msra.mxu0 0.0
      %358 = vmatpush.msra.mxu0 0.0
      %359 = vmatpush.msra.mxu0 %v242
      %360 = vmatmul.f32.gmra.mxu0 %v249
      %v361 = vpop.f32.mrf.mxu0
      %v362 = vadd.f32 %v245, %v361
      %363 = vmatmul.f32.gmra.mxu0 %v252
      %v364 = vpop.f32.mrf.mxu0
      %v365 = vadd.f32 %v245, %v364
      %366 = vmatmul.f32.gmra.mxu0 %v255
      %v367 = vpop.f32.mrf.mxu0
      %v368 = vadd.f32 %v245, %v367
      %369 = vmatmul.f32.gmra.mxu0 %v258
      %v370 = vpop.f32.mrf.mxu0
      %v371 = vadd.f32 %v245, %v370
      %372 = vmatmul.f32.gmra.mxu0 %v261
      %v373 = vpop.f32.mrf.mxu0
      %v374 = vadd.f32 %v245, %v373
      %375 = vmatmul.f32.gmra.mxu0 %v264
      %v376 = vpop.f32.mrf.mxu0
      %v377 = vadd.f32 %v245, %v376
      %378 = vmatmul.f32.gmra.mxu0 %v267
      %v379 = vpop.f32.mrf.mxu0
      %v380 = vadd.f32 %v245, %v379
      %381 = vmatmul.f32.gmra.mxu0 %v270
      %v382 = vpop.f32.mrf.mxu0
      %v383 = vadd.f32 %v245, %v382
      %384 = vmatmul.f32.gmra.mxu0 %v273
      %v385 = vpop.f32.mrf.mxu0
      %v386 = vadd.f32 %v245, %v385
      %387 = vmatmul.f32.gmra.mxu0 %v276
      %v388 = vpop.f32.mrf.mxu0
      %v389 = vadd.f32 %v245, %v388
      %390 = vmatmul.f32.gmra.mxu0 %v279
      %v391 = vpop.f32.mrf.mxu0
      %v392 = vadd.f32 %v245, %v391
      %393 = vmatmul.f32.gmra.mxu0 %v282
      %v394 = vpop.f32.mrf.mxu0
      %v395 = vadd.f32 %v245, %v394
      %396 = vmatmul.f32.gmra.mxu0 %v285
      %v397 = vpop.f32.mrf.mxu0
      %v398 = vadd.f32 %v245, %v397
      %399 = vmatmul.f32.gmra.mxu0 %v288
      %v400 = vpop.f32.mrf.mxu0
      %v401 = vadd.f32 %v245, %v400
      %402 = vmatmul.f32.gmra.mxu0 %v291
      %v403 = vpop.f32.mrf.mxu0
      %v404 = vadd.f32 %v245, %v403
      %405 = vmatmul.f32.gmra.mxu0 %v294
      %v406 = vpop.f32.mrf.mxu0
      %v407 = vadd.f32 %v245, %v406
      %408 = vmatmul.f32.gmra.mxu0 %v297
      %v409 = vpop.f32.mrf.mxu0
      %v410 = vadd.f32 %v245, %v409
      %411 = vmatmul.f32.gmra.mxu0 %v300
      %v412 = vpop.f32.mrf.mxu0
      %v413 = vadd.f32 %v245, %v412
      %414 = vmatmul.f32.gmra.mxu0 %v303
      %v415 = vpop.f32.mrf.mxu0
      %v416 = vadd.f32 %v245, %v415
      %417 = vmatmul.f32.gmra.mxu0 %v306
      %v418 = vpop.f32.mrf.mxu0
      %v419 = vadd.f32 %v245, %v418
      %420 = vmatmul.f32.gmra.mxu0 %v309
      %v421 = vpop.f32.mrf.mxu0
      %v422 = vadd.f32 %v245, %v421
      %423 = vmatmul.f32.gmra.mxu0 %v312
      %v424 = vpop.f32.mrf.mxu0
      %v425 = vadd.f32 %v245, %v424
      %426 = vmatmul.f32.gmra.mxu0 %v315
      %v427 = vpop.f32.mrf.mxu0
      %v428 = vadd.f32 %v245, %v427
      %429 = vmatmul.f32.gmra.mxu0 %v318
      %v430 = vpop.f32.mrf.mxu0
      %v431 = vadd.f32 %v245, %v430
      %432 = vmatmul.f32.gmra.mxu0 %v321
      %v433 = vpop.f32.mrf.mxu0
      %v434 = vadd.f32 %v245, %v433
      %435 = vmatmul.f32.gmra.mxu0 %v324
      %v436 = vpop.f32.mrf.mxu0
      %v437 = vadd.f32 %v245, %v436
      %438 = vmatmul.f32.gmra.mxu0 %v327
      %v439 = vpop.f32.mrf.mxu0
      %v440 = vadd.f32 %v245, %v439
      %441 = vmatmul.f32.gmra.mxu0 %v330
      %v442 = vpop.f32.mrf.mxu0
      %v443 = vadd.f32 %v245, %v442
      %444 = vmatmul.f32.gmra.mxu0 %v333
      %v445 = vpop.f32.mrf.mxu0
      %v446 = vadd.f32 %v245, %v445
      %447 = vmatmul.f32.gmra.mxu0 %v336
      %v448 = vpop.f32.mrf.mxu0
      %v449 = vadd.f32 %v245, %v448
      %450 = vmatmul.f32.gmra.mxu0 %v339
      %v451 = vpop.f32.mrf.mxu0
      %v452 = vadd.f32 %v245, %v451
      %453 = vmatmul.f32.gmra.mxu0 %v342
      %v454 = vpop.f32.mrf.mxu0
      %v455 = vadd.f32 %v245, %v454
      %456 = vdwg.mxu0
      %vm457 = vcmask 261120
      %458 = vst.msk [vmem:[%s208] sm:$0xff] %vm457, %v362
      %459 = vst.msk [vmem:[%s208 + $0x8] sm:$0xff] %vm457, %v365
      %460 = vst.msk [vmem:[%s208 + $0x10] sm:$0xff] %vm457, %v368
      %461 = vst.msk [vmem:[%s208 + $0x18] sm:$0xff] %vm457, %v371
      %462 = vst.msk [vmem:[%s208 + $0x20] sm:$0xff] %vm457, %v374
      %463 = vst.msk [vmem:[%s208 + $0x28] sm:$0xff] %vm457, %v377
      %464 = vst.msk [vmem:[%s208 + $0x30] sm:$0xff] %vm457, %v380
      %465 = vst.msk [vmem:[%s208 + $0x38] sm:$0xff] %vm457, %v383
      %466 = vst.msk [vmem:[%s208 + $0x40] sm:$0xff] %vm457, %v386
      %467 = vst.msk [vmem:[%s208 + $0x48] sm:$0xff] %vm457, %v389
      %468 = vst.msk [vmem:[%s208 + $0x50] sm:$0xff] %vm457, %v392
      %469 = vst.msk [vmem:[%s208 + $0x58] sm:$0xff] %vm457, %v395
      %470 = vst.msk [vmem:[%s208 + $0x60] sm:$0xff] %vm457, %v398
      %471 = vst.msk [vmem:[%s208 + $0x68] sm:$0xff] %vm457, %v401
      %472 = vst.msk [vmem:[%s208 + $0x70] sm:$0xff] %vm457, %v404
      %473 = vst.msk [vmem:[%s208 + $0x78] sm:$0xff] %vm457, %v407
      %474 = vst.msk [vmem:[%s208 + $0x80] sm:$0xff] %vm457, %v410
      %475 = vst.msk [vmem:[%s208 + $0x88] sm:$0xff] %vm457, %v413
      %476 = vst.msk [vmem:[%s208 + $0x90] sm:$0xff] %vm457, %v416
      %477 = vst.msk [vmem:[%s208 + $0x98] sm:$0xff] %vm457, %v419
      %478 = vst.msk [vmem:[%s208 + $0xa0] sm:$0xff] %vm457, %v422
      %479 = vst.msk [vmem:[%s208 + $0xa8] sm:$0xff] %vm457, %v425
      %480 = vst.msk [vmem:[%s208 + $0xb0] sm:$0xff] %vm457, %v428
      %481 = vst.msk [vmem:[%s208 + $0xb8] sm:$0xff] %vm457, %v431
      %482 = vst.msk [vmem:[%s208 + $0xc0] sm:$0xff] %vm457, %v434
      %483 = vst.msk [vmem:[%s208 + $0xc8] sm:$0xff] %vm457, %v437
      %484 = vst.msk [vmem:[%s208 + $0xd0] sm:$0xff] %vm457, %v440
      %485 = vst.msk [vmem:[%s208 + $0xd8] sm:$0xff] %vm457, %v443
      %486 = vst.msk [vmem:[%s208 + $0xe0] sm:$0xff] %vm457, %v446
      %487 = vst.msk [vmem:[%s208 + $0xe8] sm:$0xff] %vm457, %v449
      %488 = vst.msk [vmem:[%s208 + $0xf0] sm:$0xff] %vm457, %v452
      %489 = vst.msk [vmem:[%s208 + $0xf8] sm:$0xff] %vm457, %v455
      %s490 = smul.u32 32, %s19
      %p491 = scmp.lt.s32.totalorder %s18, 1
      %s492 = scalar_select %p491, %s18, 1
      %p493 = scmp.lt.s32.totalorder %s490, 31
      %s494 = scalar_select %p493, %s490, 31
      %s495 = smul.addr %s492, 32
      %s496 = sadd.s32 %s494, %s495
      %s497 = smul.addr %s496, 8
      %s498 = scalar_lea.vmem %s3, %s497
      // Predicated region
      $region33: #{tpu_custom_call.1} parent=31 // pred_check
        %p499 = pneg %p116
      $region34: #{tpu_custom_call.1} parent=31 // pred_check_branch
        %501 = sbr.rel (%p499) target = $region36
      $region35: #{tpu_custom_call.1} parent=31 // pred_region
        %s502 = smul.u32 32, %s19
      $region36: #{tpu_custom_call.1} parent=31 // pred_fallthru
        _
    $region32: #{tpu_custom_call.1} parent=5 // pred_fallthru
      _
    %p503 = scmp.le.s32.totalorder 2, %s9
    // Predicated region
    $region37: #{tpu_custom_call.1} parent=5 // pred_check
      %p504 = pneg %p503
    $region38: #{tpu_custom_call.1} parent=5 // pred_check_branch
      %506 = sbr.rel (%p504) target = $region40
    $region39: #{tpu_custom_call.1} parent=5 // pred_region
      %s507 = ssub.s32 %s9, 2
      // Predicated region
      $region41: #{tpu_custom_call.1} parent=39 // pred_check
        %p508 = pneg %p122
      $region42: #{tpu_custom_call.1} parent=39 // pred_check_branch
        %510 = sbr.rel (%p508) target = $region44
      $region43: #{tpu_custom_call.1} parent=39 // pred_region
        %s511 = smul.u32 32, %s21
        %p512 = scmp.lt.s32.totalorder %s20, 1
        %s513 = scalar_select %p512, %s20, 1
        %p514 = scmp.lt.s32.totalorder %s511, 31
        %s515 = scalar_select %p514, %s511, 31
        %s516 = smul.addr %s513, 32
        %s517 = sadd.s32 %s515, %s516
        %s518 = smul.addr %s517, 8
        %s519 = scalar_lea.vmem %s3, %s518
      $region44: #{tpu_custom_call.1} parent=39 // pred_fallthru
        _
    $region40: #{tpu_custom_call.1} parent=5 // pred_fallthru
      _
  $region6: #{tpu_custom_call.1} parent=0 // loop_footer
    %s13 = sadd.s32 1, %s9
  $region7: #{tpu_custom_call.1} parent=0 // loop_footer_branch
    %8 = sbr.rel target = $region3
  $region8: #{tpu_custom_call.1} parent=0 // loop_exit
    _

</llo_original>
